<compile_context>
chip_gen: v6e
topology: v6e:2x2x1
jax: 0.10.0
libtpu: 0.0.40
codegen_flags: <defaults>
</compile_context>

<pallas_src>
import jax
import jax.numpy as jnp
from jax.experimental import pallas as pl
from jax.experimental.pallas import tpu as pltpu


_LANE_TILE_CAP = 2048          # lanes per grid step (multiple of 128)
_VMEM_BUDGET = 34 << 20        # target bytes for blocks + intermediates
_VMEM_LIMIT = 48 << 20         # scoped VMEM limit (v7x physical = 64 MiB/TC)


def _round_up(x, m):
    return ((x + m - 1) // m) * m


def _sublane_pack(dtype):
    # sublane packing factor: 8 for 4-byte, 16 for 2-byte, 32 for 1-byte dtypes
    return max(8, 32 // jnp.dtype(dtype).itemsize)


def spatial_attention_kernel(params_ref, x_ref, o_ref):
    """params_ref: SMEM (3,) f32 = [w_max, w_mean / C, bias]
       x_ref:  VMEM (TN, C, T_HW)  input tile, native dtype
       o_ref:  VMEM (TN, C, T_HW)  expanded attention tile, x.dtype
    """
    C = x_ref.shape[1]
    x = x_ref[...]                            # native dtype; no full f32 copy
    # Streaming channel reduce: max in native dtype, sum accumulated in f32.
    mx = x[:, 0, :]
    sm = x[:, 0, :].astype(jnp.float32)
    for c in range(1, C):                     # C is a small static int -> unrolled
        xc = x[:, c, :]
        mx = jnp.maximum(mx, xc)
        sm = sm + xc.astype(jnp.float32)
    w_max = params_ref[0]
    w_mean_over_c = params_ref[1]             # 1/C folded into the conv weight
    bias = params_ref[2]
    att = jax.nn.sigmoid(w_max * mx.astype(jnp.float32) + w_mean_over_c * sm + bias)
    att = att.astype(o_ref.dtype)
    # Fused channel expand: write the broadcast attention directly.
    o_ref[...] = jnp.broadcast_to(att[:, None, :], o_ref.shape)


def _pick_lane_tile(hw, cap=_LANE_TILE_CAP):
    """Lane tile: full extent when small, else a lane-dense multiple of 128.
    A non-dividing tile is fine: the grid uses cdiv and tail-block OOB lanes
    only pollute outputs that Pallas drops on writeback."""
    if hw <= cap:
        return hw
    t = cap - cap % 128
    for d in range(t, 127, -128):             # prefer a clean divisor
        if hw % d == 0:
            return d
    return t


def _pick_row_tile(n, c, t_hw, in_dtype, out_dtype, budget=_VMEM_BUDGET):
    """Rows per grid step under a padding-aware VMEM budget: double-buffered
    in/out blocks with C padded to the sublane pack, plus f32 intermediates
    (max/sum/att) and one block-sized broadcast temp."""
    lanes = _round_up(t_hw, 128)
    in_item = jnp.dtype(in_dtype).itemsize
    out_item = jnp.dtype(out_dtype).itemsize
    c_in = _round_up(c, _sublane_pack(in_dtype))
    c_out = _round_up(c, _sublane_pack(out_dtype))
    per_row = (2 * c_in * lanes * in_item          # double-buffered input block
               + 2 * c_out * lanes * out_item      # double-buffered output block
               + 3 * lanes * 4                     # f32 max / sum / att temps
               + c_out * lanes * out_item)         # broadcast temp before store
    max_rows = max(1, budget // per_row)
    if n <= max_rows:
        return n
    if max_rows >= 8:
        max_rows -= max_rows % 8
    return min(n, max_rows)


def spatial_attention(x, conv_w, conv_b):
    """x: (B, T, C, H, W)
       conv_w: (1, 2, 1, 1)  Conv2d(2, 1, 1) weight
       conv_b: (1,)          Conv2d bias
       returns: (B, T, C, H, W) expanded attention map, dtype of x."""
    B, T, C, H, W = x.shape
    N = B * T
    HW = H * W
    x2 = x.reshape(N, C, HW)                  # contiguous reshape (no copy)

    t_hw = _pick_lane_tile(HW)
    tn = _pick_row_tile(N, C, t_hw, x2.dtype, x2.dtype)

    # v7x has 2 TensorCores: make sure the 'parallel' grid has >= 2 steps.
    if pl.cdiv(N, tn) * pl.cdiv(HW, t_hw) < 2:
        if N >= 2:
            tn = pl.cdiv(N, 2)
        elif t_hw > 128:
            t_hw = _round_up(pl.cdiv(t_hw, 2), 128)

    grid = (pl.cdiv(N, tn), pl.cdiv(HW, t_hw))

    # Fold the 1/C of the mean into the conv weight -> kernel uses a sum.
    params = jnp.array(
        [conv_w[0, 0, 0, 0], conv_w[0, 1, 0, 0] / C, conv_b[0]],
        dtype=jnp.float32,
    )

    att = pl.pallas_call(
        spatial_attention_kernel,
        out_shape=jax.ShapeDtypeStruct((N, C, HW), x.dtype),
        grid=grid,
        in_specs=[
            pl.BlockSpec(memory_space=pltpu.MemorySpace.SMEM),          # params
            pl.BlockSpec((tn, C, t_hw), lambda n, h: (n, 0, h)),        # x tile
        ],
        out_specs=pl.BlockSpec((tn, C, t_hw), lambda n, h: (n, 0, h)),  # expanded att
        compiler_params=pltpu.CompilerParams(
            dimension_semantics=("parallel", "parallel"),
            vmem_limit_bytes=_VMEM_LIMIT,
        ),
    )(params, x2)

    return att.reshape(B, T, C, H, W)


def reference(x, conv_w, conv_b):
    # pure-JAX reference of the PyTorch forward
    B, T, C, H, W = x.shape
    xr = x.reshape(B * T, C, H, W).astype(jnp.float32)
    mx = jnp.max(xr, axis=1, keepdims=True)
    mn = jnp.mean(xr, axis=1, keepdims=True)
    att = jax.nn.sigmoid(
        conv_w[0, 0, 0, 0] * mx + conv_w[0, 1, 0, 0] * mn + conv_b[0]
    )
    att = att.reshape(B, T, 1, H, W)
    return jnp.broadcast_to(att, (B, T, C, H, W)).astype(x.dtype)


if __name__ == "__main__":
    key = jax.random.PRNGKey(0)
    kx, kw, kb = jax.random.split(key, 3)

    B, T, C, H, W = 2, 3, 4, 16, 16
    x = jax.random.normal(kx, (B, T, C, H, W), dtype=jnp.float32)

    # deterministic Conv2d(2, 1, kernel_size=1) parameters
    conv_w = jax.random.normal(kw, (1, 2, 1, 1), dtype=jnp.float32) * 0.5
    conv_b = jax.random.normal(kb, (1,), dtype=jnp.float32) * 0.1

    out = spatial_attention(x, conv_w, conv_b)
    out = jax.block_until_ready(out)

    ref = reference(x, conv_w, conv_b)
    assert out.shape == (B, T, C, H, W)
    assert jnp.allclose(out, ref, atol=1e-5, rtol=1e-5)

    print("KERNEL_OK")
</pallas_src>

<mosaic_0001>
module attributes {stable_mosaic.version = 11 : i64} {
  func.func @spatial_attention_kernel(%arg0: i32, %arg1: i32, %arg2: memref<3xf32, #tpu.memory_space<smem>>, %arg3: memref<3x4x256xf32, #tpu.memory_space<vmem>>, %arg4: memref<3x4x256xf32, #tpu.memory_space<vmem>>) attributes {dimension_semantics = [#tpu.dimension_semantics<parallel>, #tpu.dimension_semantics<parallel>], iteration_bounds = array<i64: 2, 1>, scalar_prefetch = 0 : i64, scratch_operands = 0 : i64, tpu.core_type = #tpu.core_type<tc>, window_params = [{transform_indices = @transform_0, window_bounds = array<i64: 3>}, {transform_indices = @transform_1, window_bounds = array<i64: 3, 4, 256>}, {transform_indices = @transform_2, window_bounds = array<i64: 3, 4, 256>}]} {
    %c0 = arith.constant 0 : index
    %c0_0 = arith.constant 0 : index
    %c0_1 = arith.constant 0 : index
    %0 = vector.load %arg3[%c0, %c0_0, %c0_1] : memref<3x4x256xf32, #tpu.memory_space<vmem>>, vector<3x4x256xf32>
    %1 = vector.extract_strided_slice %0 {offsets = [0, 0, 0], sizes = [3, 1, 256], strides = [1, 1, 1]} : vector<3x4x256xf32> to vector<3x1x256xf32>
    %2 = vector.shape_cast %1 : vector<3x1x256xf32> to vector<3x256xf32>
    %3 = vector.extract_strided_slice %0 {offsets = [0, 0, 0], sizes = [3, 1, 256], strides = [1, 1, 1]} : vector<3x4x256xf32> to vector<3x1x256xf32>
    %4 = vector.shape_cast %3 : vector<3x1x256xf32> to vector<3x256xf32>
    %5 = vector.extract_strided_slice %0 {offsets = [0, 1, 0], sizes = [3, 1, 256], strides = [1, 1, 1]} : vector<3x4x256xf32> to vector<3x1x256xf32>
    %6 = vector.shape_cast %5 : vector<3x1x256xf32> to vector<3x256xf32>
    %7 = arith.maximumf %2, %6 : vector<3x256xf32>
    %8 = arith.addf %4, %6 : vector<3x256xf32>
    %9 = vector.extract_strided_slice %0 {offsets = [0, 2, 0], sizes = [3, 1, 256], strides = [1, 1, 1]} : vector<3x4x256xf32> to vector<3x1x256xf32>
    %10 = vector.shape_cast %9 : vector<3x1x256xf32> to vector<3x256xf32>
    %11 = arith.maximumf %7, %10 : vector<3x256xf32>
    %12 = arith.addf %8, %10 : vector<3x256xf32>
    %13 = vector.extract_strided_slice %0 {offsets = [0, 3, 0], sizes = [3, 1, 256], strides = [1, 1, 1]} : vector<3x4x256xf32> to vector<3x1x256xf32>
    %14 = vector.shape_cast %13 : vector<3x1x256xf32> to vector<3x256xf32>
    %15 = arith.maximumf %11, %14 : vector<3x256xf32>
    %16 = arith.addf %12, %14 : vector<3x256xf32>
    %c0_2 = arith.constant 0 : index
    %17 = memref.load %arg2[%c0_2] : memref<3xf32, #tpu.memory_space<smem>>
    %c1 = arith.constant 1 : index
    %18 = memref.load %arg2[%c1] : memref<3xf32, #tpu.memory_space<smem>>
    %c2 = arith.constant 2 : index
    %19 = memref.load %arg2[%c2] : memref<3xf32, #tpu.memory_space<smem>>
    %20 = vector.broadcast %17 : f32 to vector<3x256xf32>
    %21 = arith.mulf %20, %15 : vector<3x256xf32>
    %22 = vector.broadcast %18 : f32 to vector<3x256xf32>
    %23 = arith.mulf %22, %16 : vector<3x256xf32>
    %24 = arith.addf %21, %23 : vector<3x256xf32>
    %25 = vector.broadcast %19 : f32 to vector<3x256xf32>
    %26 = arith.addf %24, %25 : vector<3x256xf32>
    %27 = arith.negf %26 : vector<3x256xf32>
    %28 = math.exp %27 : vector<3x256xf32>
    %cst = arith.constant 1.000000e+00 : f32
    %29 = vector.broadcast %cst : f32 to vector<3x256xf32>
    %30 = arith.addf %29, %28 : vector<3x256xf32>
    %31 = arith.divf %29, %30 : vector<3x256xf32>
    %32 = vector.shape_cast %31 : vector<3x256xf32> to vector<3x1x256xf32>
    %33 = vector.shape_cast %32 : vector<3x1x256xf32> to vector<3x1x256xf32>
    %34 = vector.broadcast %33 : vector<3x1x256xf32> to vector<3x4x256xf32>
    %c0_3 = arith.constant 0 : index
    %c0_4 = arith.constant 0 : index
    %c0_5 = arith.constant 0 : index
    %35 = vector.load %arg4[%c0_3, %c0_4, %c0_5] : memref<3x4x256xf32, #tpu.memory_space<vmem>>, vector<3x4x256xf32>
    tpu.vector_store %arg4[%c0_3, %c0_4, %c0_5], %34 {strides = array<i32>} : memref<3x4x256xf32, #tpu.memory_space<vmem>>, vector<3x4x256xf32>,
    return
  }
  func.func @transform_0(%arg0: i32, %arg1: i32) -> i32 {
    %c0_i32 = arith.constant 0 : i32
    %c0_i32_0 = arith.constant 0 : i32
    return %c0_i32 : i32
  }
  func.func @transform_1(%arg0: i32, %arg1: i32) -> (i32, i32, i32) {
    %c0_i32 = arith.constant 0 : i32
    %c0_i32_0 = arith.constant 0 : i32
    return %arg0, %c0_i32, %arg1 : i32, i32, i32
  }
  func.func @transform_2(%arg0: i32, %arg1: i32) -> (i32, i32, i32) {
    %c0_i32 = arith.constant 0 : i32
    %c0_i32_0 = arith.constant 0 : i32
    return %arg0, %c0_i32, %arg1 : i32, i32, i32
  }
}

</mosaic_0001>

<llo_original>
// kernel: tpu_custom_call.1
$region0: #{tpu_custom_call.1}
  #allocation0 [shape = 'u32[]', space=smem, size = 0x4, offset = 0x4, fixed_abs, tag = 'smem constant byte address 0x4 - core index']
  #allocation1 [shape = 'u32[144,128]{1,0:T(1,128)}', space=vmem, size = 0x12000, scoped, tag = 'internal scratch']
  %s0 = inlined_call_operand.hbm [shape: f32[3], index: 0, kind: input, shape index: {}]
  %s1 = inlined_call_operand.hbm [shape: f32[6,4,256], index: 1, kind: input, shape index: {}]
  %s2 = inlined_call_operand.hbm [shape: f32[6,4,256], index: 2, kind: output, shape index: {}]
  %s3 = sld [smem:[#allocation0]]
  $region49: #{tpu_custom_call.1} parent=0
    _
  %s5 = ssub.s32 1, %s3
  %s6 = scalar_select 0, %s5, %s3
  $region1: #{tpu_custom_call.1} parent=0
    #allocation2 [shape = 'u8[512]{0}', space=smem, size = 0x200, scoped, tag = 'input window, operand 0, single buffered']
    #allocation3 [shape = 's32[2]{0}', space=sflag, size = 0x8, scoped, tag = 'scoped memory for tpu_custom_call.1']
    #allocation4 [shape = 's32[2]{0}', space=sflag, size = 0x8, scoped, tag = 'scoped memory for tpu_custom_call.1']
    #allocation5 [shape = 's32[2]{0}', space=sflag, size = 0x8, scoped, tag = 'scoped memory for tpu_custom_call.1']
    #allocation6 [shape = 'u8[24576]{0}', space=vmem, size = 0x6000, scoped, tag = 'input window, operand 1']
    #allocation7 [shape = 'u8[24576]{0}', space=vmem, size = 0x6000, scoped, tag = 'output window, operand 0']
    %7 = vsyncpa [#allocation5], 0
    %8 = vsyncpa [#allocation3], 0
    %s9 = scalar_lea.sflag [#allocation3], 1
    %10 = vsyncpa %s9, 0
    %11 = vsyncpa [#allocation4], 0
    %s12 = scalar_lea.sflag [#allocation4], 1
    %13 = vsyncpa %s12, 0
    loop: start=0, step=1, limit=4
    $region2: #{tpu_custom_call.1} parent=1 // loop_pre_header
      _
    $region3: #{tpu_custom_call.1} parent=1 // loop_header
      %s15 = sphi 0, %s19
      %p16 = scmp.ge.s32.totalorder %s15, 4
      %s22 = sphi 0, %s34
      %s23 = sphi 0, %s30
      %s24 = sphi 0, %s22
      %s25 = sphi 0, %s23
      %s26 = sphi 0, %s24
      %s27 = sphi 0, %s25
      %s35 = sphi 0, %s35
      %s37 = sphi 0, %s35
      %s38 = sphi 0, %s37
      %s52 = sphi 0, %s38
      %s60 = sphi 0, %s62
      %s63 = sphi 0, %s60
      %s64 = sphi 0, %s63
      %s80 = sphi 0, %s64
      %s88 = sphi 0, %s90
      %s91 = sphi 0, %s88
      %s92 = sphi 0, %s91
      %s108 = sphi 0, %s92
    $region4: #{tpu_custom_call.1} parent=1 // loop_header_branch
      %18 = sbr.rel (%p16) target = $region8
    $region5: #{tpu_custom_call.1} parent=1 // loop_body
      %s20 = ssub.s32 %s15, 1
      %s21 = ssub.s32 %s15, 2
      %s28 = sadd.s32 1, %s23
      %p29 = scmp.ge.s32.totalorder %s28, 1
      %s30 = scalar_select %p29, 0, %s28
      %s31 = sadd.s32 1, %s22
      %s32 = scalar_select %p29, %s31, %s22
      %p33 = scmp.ge.s32.totalorder %s32, 2
      %s34 = scalar_select %p33, 0, %s32
      %s36 = sadd.s32 %s35, 1
      %p39 = scmp.eq.s32.totalorder %s15, 1
      %p40 = scmp.ne.s32.totalorder %s35, %s37
      %p41 = scmp.eq.s32.totalorder %s15, 0
      %p42 = por %p40, %p41
      %p43 = scmp.ne.s32.totalorder %s35, %s37
      %p44 = scmp.eq.s32.totalorder %s20, 1
      %p45 = por %p43, %p44
      %p46 = scmp.ne.s32.totalorder %s37, %s38
      %p47 = scmp.eq.s32.totalorder %s20, 0
      %p48 = por %p46, %p47
      %p49 = scmp.ne.s32.totalorder %s37, %s38
      %p50 = scmp.eq.s32.totalorder %s21, 1
      %p51 = por %p49, %p50
      %p53 = scmp.ne.s32.totalorder %s38, %s52
      %p54 = scmp.eq.s32.totalorder %s21, 0
      %p55 = por %p53, %p54
      %s56 = ssub.s32 %s22, %s34
      %s57 = ssub.s32 %s23, %s30
      %s58 = sor.u32 %s56, %s57
      %p59 = scmp.eq.s32.totalorder %s58, 0
      %s61 = sadd.s32 %s60, 1
      %s62 = scalar_select %p59, %s60, %s61
      %p65 = pneg %p59
      %p66 = scmp.eq.s32.totalorder %s15, 1
      %p67 = por %p65, %p66
      %p68 = scmp.ne.s32.totalorder %s60, %s63
      %p69 = scmp.eq.s32.totalorder %s15, 0
      %p70 = por %p68, %p69
      %p71 = scmp.ne.s32.totalorder %s60, %s63
      %p72 = scmp.eq.s32.totalorder %s20, 1
      %p73 = por %p71, %p72
      %p74 = scmp.ne.s32.totalorder %s63, %s64
      %p75 = scmp.eq.s32.totalorder %s20, 0
      %p76 = por %p74, %p75
      %p77 = scmp.ne.s32.totalorder %s63, %s64
      %p78 = scmp.eq.s32.totalorder %s21, 1
      %p79 = por %p77, %p78
      %p81 = scmp.ne.s32.totalorder %s64, %s80
      %p82 = scmp.eq.s32.totalorder %s21, 0
      %p83 = por %p81, %p82
      %s84 = ssub.s32 %s22, %s34
      %s85 = ssub.s32 %s23, %s30
      %s86 = sor.u32 %s84, %s85
      %p87 = scmp.eq.s32.totalorder %s86, 0
      %s89 = sadd.s32 %s88, 1
      %s90 = scalar_select %p87, %s88, %s89
      %p93 = pneg %p87
      %p94 = scmp.eq.s32.totalorder %s15, 1
      %p95 = por %p93, %p94
      %p96 = scmp.ne.s32.totalorder %s88, %s91
      %p97 = scmp.eq.s32.totalorder %s15, 0
      %p98 = por %p96, %p97
      %p99 = scmp.ne.s32.totalorder %s88, %s91
      %p100 = scmp.eq.s32.totalorder %s20, 1
      %p101 = por %p99, %p100
      %p102 = scmp.ne.s32.totalorder %s91, %s92
      %p103 = scmp.eq.s32.totalorder %s20, 0
      %p104 = por %p102, %p103
      %p105 = scmp.ne.s32.totalorder %s91, %s92
      %p106 = scmp.eq.s32.totalorder %s21, 1
      %p107 = por %p105, %p106
      %p109 = scmp.ne.s32.totalorder %s92, %s108
      %p110 = scmp.eq.s32.totalorder %s21, 0
      %p111 = por %p109, %p110
      %p112 = scmp.le.s32.totalorder 1, %s15
      %p113 = scmp.lt.s32.totalorder %s15, 3
      %p114 = pnand %p112, %p113
      %p115 = pneg %p114
      // Predicated region
      $region9: #{tpu_custom_call.1} parent=5 // pred_check
        _
      $region10: #{tpu_custom_call.1} parent=5 // pred_check_branch
        %117 = sbr.rel (%p114) target = $region12
      $region11: #{tpu_custom_call.1} parent=5 // pred_region
        %s118 = ssub.s32 %s15, 1
        // Predicated region
        $region13: #{tpu_custom_call.1} parent=11 // pred_check
          %p119 = pneg %p48
        $region14: #{tpu_custom_call.1} parent=11 // pred_check_branch
          %121 = sbr.rel (%p119) target = $region16
        $region15: #{tpu_custom_call.1} parent=11 // pred_region
          %s123 = ssub.s32 16, 16
          %124 = vsyncadd [#allocation5], %s123
          %127 = dma.hbm_to_smem %s0, 16, [#allocation2], [#allocation5]
        $region16: #{tpu_custom_call.1} parent=11 // pred_fallthru
          _
      $region12: #{tpu_custom_call.1} parent=5 // pred_fallthru
        _
      %p128 = scmp.lt.s32.totalorder %s15, 2
      // Predicated region
      $region17: #{tpu_custom_call.1} parent=5 // pred_check
        %p129 = pneg %p128
      $region18: #{tpu_custom_call.1} parent=5 // pred_check_branch
        %131 = sbr.rel (%p129) target = $region20
      $region19: #{tpu_custom_call.1} parent=5 // pred_region
        // Predicated region
        $region21: #{tpu_custom_call.1} parent=19 // pred_check
          %p132 = pneg %p70
        $region22: #{tpu_custom_call.1} parent=19 // pred_check_branch
          %134 = sbr.rel (%p132) target = $region24
        $region23: #{tpu_custom_call.1} parent=19 // pred_region
          %s135 = sand.u32 %s60, 1
          %s136 = scalar_lea.sflag [#allocation3], %s135
          %s137 = sand.u32 %s60, 1
          %s138 = smul.addr %s137, 24
          %s139 = scalar_lea.vmem [#allocation6], %s138
          %s140 = smul.u32 3, %s22
          %s141 = smul.u32 2, %s23
          %s143 = ssub.s32 384, 384
          %144 = vsyncadd %s136, %s143
          %s145 = smul.addr %s140, 2
          %s146 = sadd.s32 %s141, %s145
          %s147 = smul.addr %s146, 64
          %s148 = scalar_lea.hbm %s1, %s147
          %s149 = sshll.u32 %s139, 4
          %s150 = int_to_ptr.vmem [resolvable:$true] %s149
          %155 = dma.hbm_to_vmem [thread:$0]  %s148, 384, %s150, %s136, 128, 128, 8
        $region24: #{tpu_custom_call.1} parent=19 // pred_fallthru
          _
      $region20: #{tpu_custom_call.1} parent=5 // pred_fallthru
        _
      %p156 = scmp.le.s32.totalorder 1, %s15
      %p157 = scmp.lt.s32.totalorder %s15, 3
      %p158 = pnand %p156, %p157
      %p159 = pneg %p158
      // Predicated region
      $region25: #{tpu_custom_call.1} parent=5 // pred_check
        _
      $region26: #{tpu_custom_call.1} parent=5 // pred_check_branch
        %161 = sbr.rel (%p158) target = $region28
      $region27: #{tpu_custom_call.1} parent=5 // pred_region
        %s162 = ssub.s32 %s15, 1
        // Predicated region
        $region29: #{tpu_custom_call.1} parent=27 // pred_check
          %p163 = pneg %p48
        $region30: #{tpu_custom_call.1} parent=27 // pred_check_branch
          %165 = sbr.rel (%p163) target = $region32
        $region31: #{tpu_custom_call.1} parent=27 // pred_region
          %166 = dma.done [#allocation5], 16
        $region32: #{tpu_custom_call.1} parent=27 // pred_fallthru
          _
        %s167 = sand.u32 %s63, 1
        %s168 = scalar_lea.sflag [#allocation3], %s167
        %s169 = sand.u32 %s63, 1
        %s170 = smul.addr %s169, 24
        %s171 = scalar_lea.vmem [#allocation6], %s170
        // Predicated region
        $region33: #{tpu_custom_call.1} parent=27 // pred_check
          %p172 = pneg %p76
        $region34: #{tpu_custom_call.1} parent=27 // pred_check_branch
          %174 = sbr.rel (%p172) target = $region36
        $region35: #{tpu_custom_call.1} parent=27 // pred_region
          %175 = dma.done %s168, 384
        $region36: #{tpu_custom_call.1} parent=27 // pred_fallthru
          _
        %176 = sfence
        %p177 = pneg %p48
        %p178 = pneg %p45
        %s179 = sand.u32 %s63, 1
        %s180 = scalar_lea.sflag [#allocation3], %s179
        %s181 = sand.u32 %s63, 1
        %s182 = smul.addr %s181, 24
        %s183 = scalar_lea.vmem [#allocation6], %s182
        %p184 = pneg %p76
        %p185 = pneg %p73
        %p186 = pneg %p104
        %p187 = pneg %p101
        %s188 = sand.u32 %s91, 1
        %s189 = scalar_lea.sflag [#allocation4], %s188
        %s190 = sand.u32 %s91, 1
        %s191 = smul.addr %s190, 24
        %s192 = scalar_lea.vmem [#allocation7], %s191
        %s193 = smul.u32 3, %s24
        %s194 = smul.u32 2, %s25
        %s195 = smul.u32 3, %s24
        %s196 = smul.u32 2, %s25
        %v197 = vld [vmem:[%s171] sm:$0xff]
        %v198 = vld [vmem:[%s171 + $0x8] sm:$0xff]
        %v199 = vld [vmem:[%s171 + $0x10] sm:$0xff]
        %v203 = vrot.slane %v197, 5
        %v204 = vrot.slane %v203, 4
        %v205 = vrot.slane %v198, 5
        %v206 = vrot.slane %v205, 4
        %v207 = vrot.slane %v199, 5
        %v208 = vrot.slane %v207, 4
        %v212 = vmax.f32 %v197, %v204
        %v213 = vmax.f32 %v198, %v206
        %v214 = vmax.f32 %v199, %v208
        %v215 = vadd.f32 %v197, %v204
        %v216 = vadd.f32 %v198, %v206
        %v217 = vadd.f32 %v199, %v208
        %v218 = vrot.slane %v197, 6
        %v219 = vrot.slane %v218, 4
        %v220 = vrot.slane %v198, 6
        %v221 = vrot.slane %v220, 4
        %v222 = vrot.slane %v199, 6
        %v223 = vrot.slane %v222, 4
        %v227 = vmax.f32 %v212, %v219
        %v228 = vmax.f32 %v213, %v221
        %v229 = vmax.f32 %v214, %v223
        %v230 = vadd.f32 %v215, %v219
        %v231 = vadd.f32 %v216, %v221
        %v232 = vadd.f32 %v217, %v223
        %v233 = vrot.slane %v197, 7
        %v234 = vrot.slane %v233, 4
        %v235 = vrot.slane %v198, 7
        %v236 = vrot.slane %v235, 4
        %v237 = vrot.slane %v199, 7
        %v238 = vrot.slane %v237, 4
        %v242 = vmax.f32 %v227, %v234
        %v243 = vmax.f32 %v228, %v236
        %v244 = vmax.f32 %v229, %v238
        %v245 = vadd.f32 %v230, %v234
        %v246 = vadd.f32 %v231, %v236
        %v247 = vadd.f32 %v232, %v238
        %s248 = sld [smem:[#allocation2]]
        %s249 = sld [smem:[#allocation2 + $0x1]]
        %s250 = sld [smem:[#allocation2 + $0x2]]
        %v251 = vstv %s248
        %v252 = vmul.f32 %v251, %v242
        %v253 = vmul.f32 %v251, %v243
        %v254 = vmul.f32 %v251, %v244
        %v255 = vstv %s249
        %v256 = vmul.f32 %v255, %v245
        %v257 = vmul.f32 %v255, %v246
        %v258 = vmul.f32 %v255, %v247
        %v259 = vadd.f32 %v252, %v256
        %v260 = vadd.f32 %v253, %v257
        %v261 = vadd.f32 %v254, %v258
        %v262 = vstv %s250
        %v263 = vadd.f32 %v259, %v262
        %v264 = vadd.f32 %v260, %v262
        %v265 = vadd.f32 %v261, %v262
        %v266 = vxor.u32 %v263, 2147483648
        %v267 = vxor.u32 %v264, 2147483648
        %v268 = vxor.u32 %v265, 2147483648
        %v269 = vmul.f32 %v266, 1.442695
        %v270 = vpow.pop %v269
        %v271 = vmul.f32 %v267, 1.442695
        %v272 = vpow.pop %v271
        %v273 = vmul.f32 %v268, 1.442695
        %v274 = vpow.pop %v273
        %v275 = vadd.f32 %v270, 1.0
        %v276 = vadd.f32 %v272, 1.0
        %v277 = vadd.f32 %v274, 1.0
        %v278 = vrcp.pop %v275
        %v279 = vmul.f32 1.0, %v278
        %v280 = vrcp.pop %v276
        %v281 = vmul.f32 1.0, %v280
        %v282 = vrcp.pop %v277
        %v283 = vmul.f32 1.0, %v282
        %v287 = vlaneseq
        %v288 = vshrl.u32 %v287, 7
        %v289 = vsub.s32 0, %v288
        %v290 = vrot.slane %v279, %v289
        %v291 = vlaneseq
        %v292 = vshrl.u32 %v291, 7
        %v293 = vsub.s32 4, %v292
        %v294 = vrot.slane %v279, %v293
        %v295 = vlaneseq
        %v296 = vshrl.u32 %v295, 7
        %v297 = vsub.s32 0, %v296
        %v298 = vrot.slane %v281, %v297
        %v299 = vlaneseq
        %v300 = vshrl.u32 %v299, 7
        %v301 = vsub.s32 4, %v300
        %v302 = vrot.slane %v281, %v301
        %v303 = vlaneseq
        %v304 = vshrl.u32 %v303, 7
        %v305 = vsub.s32 0, %v304
        %v306 = vrot.slane %v283, %v305
        %v307 = vlaneseq
        %v308 = vshrl.u32 %v307, 7
        %v309 = vsub.s32 4, %v308
        %v310 = vrot.slane %v283, %v309
        %v317 = vlaneseq
        %v318 = vshrl.u32 %v317, 7
        %v319 = vsub.s32 0, %v318
        %v320 = vrot.slane %v290, %v319
        %v321 = vlaneseq
        %v322 = vshrl.u32 %v321, 7
        %v323 = vsub.s32 0, %v322
        %v324 = vrot.slane %v294, %v323
        %v325 = vlaneseq
        %v326 = vshrl.u32 %v325, 7
        %v327 = vsub.s32 0, %v326
        %v328 = vrot.slane %v298, %v327
        %v329 = vlaneseq
        %v330 = vshrl.u32 %v329, 7
        %v331 = vsub.s32 0, %v330
        %v332 = vrot.slane %v302, %v331
        %v333 = vlaneseq
        %v334 = vshrl.u32 %v333, 7
        %v335 = vsub.s32 0, %v334
        %v336 = vrot.slane %v306, %v335
        %v337 = vlaneseq
        %v338 = vshrl.u32 %v337, 7
        %v339 = vsub.s32 0, %v338
        %v340 = vrot.slane %v310, %v339
        %v347 = vcombine.low %v320, %v324
        %v348 = vcombine.low %v328, %v332
        %v349 = vcombine.low %v336, %v340
        %353 = vst [vmem:[%s192] sm:$0xff] %v347
        %354 = vst [vmem:[%s192 + $0x8] sm:$0xff] %v348
        %355 = vst [vmem:[%s192 + $0x10] sm:$0xff] %v349
        %s356 = sand.u32 %s91, 1
        %s357 = scalar_lea.sflag [#allocation4], %s356
        %s358 = sand.u32 %s91, 1
        %s359 = smul.addr %s358, 24
        %s360 = scalar_lea.vmem [#allocation7], %s359
        // Predicated region
        $region37: #{tpu_custom_call.1} parent=27 // pred_check
          %p361 = pneg %p101
        $region38: #{tpu_custom_call.1} parent=27 // pred_check_branch
          %363 = sbr.rel (%p361) target = $region40
        $region39: #{tpu_custom_call.1} parent=27 // pred_region
          %s364 = smul.u32 3, %s24
          %s365 = smul.u32 2, %s25
          %s367 = ssub.s32 384, 384
          %368 = vsyncadd %s357, %s367
          %s369 = smul.addr %s364, 2
          %s370 = sadd.s32 %s365, %s369
          %s371 = smul.addr %s370, 64
          %s372 = scalar_lea.hbm %s2, %s371
          %s373 = sshll.u32 %s360, 4
          %s374 = int_to_ptr.vmem [resolvable:$true] %s373
          %379 = dma.vmem_to_hbm [thread:$0]  %s374, 384, %s372, %s357, 128, 128, 8
        $region40: #{tpu_custom_call.1} parent=27 // pred_fallthru
          _
      $region28: #{tpu_custom_call.1} parent=5 // pred_fallthru
        _
      %p380 = scmp.le.s32.totalorder 2, %s15
      // Predicated region
      $region41: #{tpu_custom_call.1} parent=5 // pred_check
        %p381 = pneg %p380
      $region42: #{tpu_custom_call.1} parent=5 // pred_check_branch
        %383 = sbr.rel (%p381) target = $region44
      $region43: #{tpu_custom_call.1} parent=5 // pred_region
        %s384 = ssub.s32 %s15, 2
        // Predicated region
        $region45: #{tpu_custom_call.1} parent=43 // pred_check
          %p385 = pneg %p107
        $region46: #{tpu_custom_call.1} parent=43 // pred_check_branch
          %387 = sbr.rel (%p385) target = $region48
        $region47: #{tpu_custom_call.1} parent=43 // pred_region
          %s388 = sand.u32 %s92, 1
          %s389 = scalar_lea.sflag [#allocation4], %s388
          %s390 = sand.u32 %s92, 1
          %s391 = smul.addr %s390, 24
          %s392 = scalar_lea.vmem [#allocation7], %s391
          %393 = dma.done %s389, 384
        $region48: #{tpu_custom_call.1} parent=43 // pred_fallthru
          _
      $region44: #{tpu_custom_call.1} parent=5 // pred_fallthru
        _
    $region6: #{tpu_custom_call.1} parent=1 // loop_footer
      %s19 = sadd.s32 1, %s15
    $region7: #{tpu_custom_call.1} parent=1 // loop_footer_branch
      %14 = sbr.rel target = $region3
    $region8: #{tpu_custom_call.1} parent=1 // loop_exit
      _
    %394 = vsyncpa [#allocation3], 1
    %s395 = scalar_lea.sflag [#allocation3], 1
    %396 = vsyncpa %s395, 1
    %397 = vsyncpa [#allocation4], 1
    %s398 = scalar_lea.sflag [#allocation4], 1
    %399 = vsyncpa %s398, 1
    %400 = vsyncpa [#allocation5], 1
    %s401 = scalar_lea.sflag [#allocation5], 1
    %402 = vsyncpa %s401, 1

</llo_original>
